<compile_context>
chip_gen: v7x
topology: tpu7x:2x2x1
jax: 0.10.0
libtpu: 0.0.40
codegen_flags: <defaults>
</compile_context>

<pallas_src>
import functools

import jax
import jax.numpy as jnp
from jax.experimental import pallas as pl
from jax.experimental.pallas import tpu as pltpu


def autopad(k, p=None):
    # YOLO 'same' autopad
    if p is None:
        p = k // 2
    return p


def _round_up(x, m):
    return ((x + m - 1) // m) * m


def _vmem_budget_bytes():
    try:
        cap = pltpu.get_tpu_info().vmem_capacity_bytes
    except Exception:
        cap = 64 * 1024 * 1024  # conservative (v7x-sized) fallback
    # Leave headroom for Mosaic internal scratch: 3/4 of physical, <= 96 MiB.
    return int(min((cap * 3) // 4, 96 * 1024 * 1024))


def _pick_k_tiling(K):
    """Return (tk, Kp). Prefer a single reduction step / no K padding."""
    if K <= 4096:
        return K, K
    for tk in range(2048, 127, -128):  # largest multiple of 128 dividing K
        if K % tk == 0:
            return tk, K
    tk = 512  # rare fallback (K > 4096 and not a multiple of 128)
    return tk, _round_up(K, tk)


def _pick_tm(tm_cap, budget, footprint):
    cands = sorted(
        {c for c in (2048, 1536, 1024, 768, 512, 384, 256, 128, 64, 32, 16, 8, tm_cap)
         if 8 <= c <= tm_cap},
        reverse=True,
    )
    if not cands:
        cands = [8]
    for c in cands:
        if footprint(c) <= budget:
            return c
    return cands[-1]


def _silu(x):
    # SiLU = x * sigmoid(x); sigmoid via EUP exp + approx reciprocal.
    # Clamp the exponent so exp never overflows to +inf (keeps approx recip safe).
    e = jnp.exp(jnp.minimum(-x, 60.0))
    return x * pl.reciprocal(1.0 + e, approx=True)


def _mm_bias_silu_kernel(p_ref, w_ref, b_ref, o_ref):
    # Single reduction step: no accumulator scratch, no init/finalize branches.
    acc = jnp.dot(p_ref[...], w_ref[...], preferred_element_type=jnp.float32)
    acc = acc + b_ref[...]
    o_ref[...] = _silu(acc).astype(o_ref.dtype)


def _mm_bias_silu_acc_kernel(p_ref, w_ref, b_ref, o_ref, acc_ref):
    # K-tiled variant: f32 VMEM accumulator lives across the kk grid axis.
    kk = pl.program_id(2)

    @pl.when(kk == 0)
    def _():
        acc_ref[...] = jnp.zeros_like(acc_ref)

    acc_ref[...] += jnp.dot(
        p_ref[...], w_ref[...], preferred_element_type=jnp.float32
    )

    @pl.when(kk == pl.num_programs(2) - 1)
    def _():
        o_ref[...] = _silu(acc_ref[...] + b_ref[...]).astype(o_ref.dtype)


@functools.partial(jax.jit, static_argnames=("k", "s", "p"))
def tt_conv_forward(x_nchw, weight, bias, *, k, s, p=None):
    """x_nchw: (N, c1, H, W); weight: (c2, c1, k, k); bias: (c2,). Returns NCHW."""
    N, c1, H, W = x_nchw.shape
    c2 = weight.shape[0]
    pad = autopad(k, p)
    Ho = (H + 2 * pad - k) // s + 1
    Wo = (W + 2 * pad - k) // s + 1

    # ---- glue: NCHW -> NHWC (bf16), spatial pad, im2col (kh,kw major, c1 minor) ----
    x_nhwc = jnp.transpose(x_nchw, (0, 2, 3, 1)).astype(jnp.bfloat16)
    xp = jnp.pad(x_nhwc, ((0, 0), (pad, pad), (pad, pad), (0, 0)))
    slices = [
        xp[:, kh:kh + Ho * s:s, kw:kw + Wo * s:s, :]
        for kh in range(k) for kw in range(k)
    ]
    patches = jnp.concatenate(slices, axis=-1) if len(slices) > 1 else slices[0]
    K = k * k * c1
    M = N * Ho * Wo
    patches = patches.reshape(M, K)  # bf16, no K padding in the common case

    # weight (c2, c1, kh, kw) -> (kh, kw, c1, c2) -> (K, c2): matches patch layout
    w2d = jnp.transpose(weight, (2, 3, 1, 0)).reshape(K, c2).astype(jnp.bfloat16)
    b2d = bias.reshape(1, c2).astype(jnp.float32)

    # ---- tiling (VMEM-budget aware, lane-dense output) ----
    LANE, BF16, F32 = 128, 2, 4
    c2p = _round_up(c2, LANE)
    tk, Kp = _pick_k_tiling(K)
    ksteps = Kp // tk
    budget = _vmem_budget_bytes()
    tm_cap = max(8, min(2048, _round_up(M, 8)))

    def resident_fp(tm):  # full-weight-resident footprint (double-buffered blocks)
        return (2 * tm * Kp * BF16      # patches
                + 2 * Kp * c2p * BF16   # resident weight
                + 2 * tm * c2p * BF16   # bf16 output
                + 2 * c2p * F32)        # bias

    use_resident = (ksteps == 1) and (resident_fp(min(512, tm_cap)) <= budget)

    if use_resident:
        # Weights/bias DMA'd from HBM exactly once; patches and output exactly once.
        tm = _pick_tm(tm_cap, budget, resident_fp)
        Mp = _round_up(M, tm)
        grid = (Mp // tm,)
        in_specs = [
            pl.BlockSpec((tm, Kp), lambda i: (i, 0)),
            pl.BlockSpec((Kp, c2p), lambda i: (0, 0)),   # invariant -> fetched once
            pl.BlockSpec((1, c2p), lambda i: (0, 0)),
        ]
        out_specs = pl.BlockSpec((tm, c2p), lambda i: (i, 0))
        kernel = _mm_bias_silu_kernel
        scratch = []
        dims = ("parallel",)
    else:
        tn = 512 if c2p % 512 == 0 else (256 if c2p % 256 == 0 else 128)
        tn = min(tn, c2p)

        def tiled_fp(tm):
            return (2 * tm * tk * BF16 + 2 * tk * tn * BF16 + 2 * tm * tn * BF16
                    + 2 * tn * F32 + (tm * tn * F32 if ksteps > 1 else 0))

        tm = _pick_tm(tm_cap, budget, tiled_fp)
        Mp = _round_up(M, tm)
        if ksteps == 1:
            grid = (Mp // tm, c2p // tn)
            in_specs = [
                pl.BlockSpec((tm, tk), lambda i, j: (i, 0)),
                pl.BlockSpec((tk, tn), lambda i, j: (0, j)),
                pl.BlockSpec((1, tn), lambda i, j: (0, j)),
            ]
            out_specs = pl.BlockSpec((tm, tn), lambda i, j: (i, j))
            kernel = _mm_bias_silu_kernel
            scratch = []
            dims = ("parallel", "parallel")
        else:
            grid = (Mp // tm, c2p // tn, ksteps)
            in_specs = [
                pl.BlockSpec((tm, tk), lambda i, j, kk: (i, kk)),
                pl.BlockSpec((tk, tn), lambda i, j, kk: (kk, j)),
                pl.BlockSpec((1, tn), lambda i, j, kk: (0, j)),
            ]
            out_specs = pl.BlockSpec((tm, tn), lambda i, j, kk: (i, j))
            kernel = _mm_bias_silu_acc_kernel
            scratch = [pltpu.VMEM((tm, tn), jnp.float32)]
            dims = ("parallel", "parallel", "arbitrary")

    # Pad only what is required: M remainder rows (< tm), K only in the rare
    # non-divisible fallback, and weight/bias channels up to the lane width.
    if Mp != M or Kp != K:
        patches = jnp.pad(patches, ((0, Mp - M), (0, Kp - K)))
    if Kp != K or c2p != c2:
        w2d = jnp.pad(w2d, ((0, Kp - K), (0, c2p - c2)))
    if c2p != c2:
        b2d = jnp.pad(b2d, ((0, 0), (0, c2p - c2)))

    out2d = pl.pallas_call(
        kernel,
        out_shape=jax.ShapeDtypeStruct((Mp, c2p), jnp.bfloat16),  # bf16 writeback
        grid_spec=pltpu.PrefetchScalarGridSpec(
            num_scalar_prefetch=0,
            grid=grid,
            in_specs=in_specs,
            out_specs=out_specs,
            scratch_shapes=scratch,
        ),
        compiler_params=pltpu.CompilerParams(
            dimension_semantics=dims,
            allow_input_fusion=[True, False, False],  # let XLA fuse im2col producer
            vmem_limit_bytes=budget,
        ),
        cost_estimate=pl.CostEstimate(
            flops=2 * M * K * c2,
            transcendentals=M * c2,
            bytes_accessed=M * K * BF16 + K * c2 * BF16 + M * c2 * BF16 + c2 * F32,
        ),
    )(patches, w2d, b2d)

    out = out2d[:M, :c2].reshape(N, Ho, Wo, c2)
    # TODO(synk): downstream YOLO layers could consume NHWC/bf16 directly and skip
    # this transpose + upcast; kept to preserve the module's NCHW output contract.
    return jnp.transpose(out, (0, 3, 1, 2)).astype(x_nchw.dtype)


if __name__ == "__main__":
    # Small, deterministic example consistent with TtConv(c1=4, c2=8, k=3, s=1)
    key = jax.random.PRNGKey(0)
    kx, kw, kb = jax.random.split(key, 3)

    N, c1, H, W = 2, 4, 16, 16
    c2, k, s = 8, 3, 1

    x = jax.random.normal(kx, (N, c1, H, W), dtype=jnp.float32)
    weight = jax.random.normal(kw, (c2, c1, k, k), dtype=jnp.float32) * 0.1
    bias = jax.random.normal(kb, (c2,), dtype=jnp.float32) * 0.1

    out = tt_conv_forward(x, weight, bias, k=k, s=s, p=None)
    out = jax.block_until_ready(out)

    # Reference: XLA conv (bf16 operands, f32 accumulation, matching the kernel) + SiLU
    ref = jax.lax.conv_general_dilated(
        x.astype(jnp.bfloat16), weight.astype(jnp.bfloat16),
        window_strides=(s, s),
        padding=[(autopad(k), autopad(k))] * 2,
        dimension_numbers=("NCHW", "OIHW", "NCHW"),
        preferred_element_type=jnp.float32,
    ) + bias.reshape(1, c2, 1, 1)
    ref = ref * jax.nn.sigmoid(ref)

    assert out.shape == (N, c2, H, W), out.shape
    err = float(jnp.max(jnp.abs(out.astype(jnp.float32) - ref)))
    assert jnp.allclose(out.astype(jnp.float32), ref, atol=2e-2, rtol=2e-2), err

    print("KERNEL_OK")
</pallas_src>

<mosaic_0001>
module attributes {stable_mosaic.version = 11 : i64} {
  func.func @_mm_bias_silu_kernel(%arg0: i32, %arg1: memref<512x36xbf16, #tpu.memory_space<vmem>>, %arg2: memref<36x128xbf16, #tpu.memory_space<vmem>>, %arg3: memref<1x128xf32, #tpu.memory_space<vmem>>, %arg4: memref<512x128xbf16, #tpu.memory_space<vmem>>) attributes {dimension_semantics = [#tpu.dimension_semantics<parallel>], iteration_bounds = array<i64: 1>, scalar_prefetch = 0 : i64, scratch_operands = 0 : i64, tpu.core_type = #tpu.core_type<tc>, window_params = [{transform_indices = @transform_0, window_bounds = array<i64: 512, 36>}, {pipeline_mode = #tpu.pipeline_mode<synchronous>, transform_indices = @transform_1, window_bounds = array<i64: 36, 128>}, {pipeline_mode = #tpu.pipeline_mode<synchronous>, transform_indices = @transform_2, window_bounds = array<i64: 1, 128>}, {transform_indices = @transform_3, window_bounds = array<i64: 512, 128>}]} {
    %c0 = arith.constant 0 : index
    %c0_0 = arith.constant 0 : index
    %0 = vector.load %arg1[%c0, %c0_0] : memref<512x36xbf16, #tpu.memory_space<vmem>>, vector<512x36xbf16>
    %c0_1 = arith.constant 0 : index
    %c0_2 = arith.constant 0 : index
    %1 = vector.load %arg2[%c0_1, %c0_2] : memref<36x128xbf16, #tpu.memory_space<vmem>>, vector<36x128xbf16>
    %cst = arith.constant dense<0.000000e+00> : vector<512x128xf32>
    %2 = tpu.matmul %0, %1, %cst {dimension_numbers = #tpu.dot_dimension_numbers<[1], [0], [0], [1], [0, 0, 1, 1], [], []>} : vector<512x36xbf16>, vector<36x128xbf16>, vector<512x128xf32> -> vector<512x128xf32>
    %c0_3 = arith.constant 0 : index
    %c0_4 = arith.constant 0 : index
    %3 = vector.load %arg3[%c0_3, %c0_4] : memref<1x128xf32, #tpu.memory_space<vmem>>, vector<1x128xf32>
    %4 = vector.broadcast %3 : vector<1x128xf32> to vector<512x128xf32>
    %5 = arith.addf %2, %4 : vector<512x128xf32>
    %cst_5 = arith.constant 0.000000e+00 : f32
    %6 = vector.broadcast %cst_5 : f32 to vector<512x128xf32>
    %7 = arith.subf %6, %5 : vector<512x128xf32>
    %cst_6 = arith.constant 6.000000e+01 : f32
    %8 = vector.broadcast %cst_6 : f32 to vector<512x128xf32>
    %9 = arith.minimumf %7, %8 : vector<512x128xf32>
    %10 = math.exp %9 : vector<512x128xf32>
    %cst_7 = arith.constant 1.000000e+00 : f32
    %11 = vector.broadcast %cst_7 : f32 to vector<512x128xf32>
    %12 = arith.addf %11, %10 : vector<512x128xf32>
    %13 = tpu.reciprocal %12 {approx = true} : vector<512x128xf32> -> vector<512x128xf32>
    %14 = arith.mulf %5, %13 : vector<512x128xf32>
    %15 = arith.truncf %14 : vector<512x128xf32> to vector<512x128xbf16>
    %c0_8 = arith.constant 0 : index
    %c0_9 = arith.constant 0 : index
    %16 = vector.load %arg4[%c0_8, %c0_9] : memref<512x128xbf16, #tpu.memory_space<vmem>>, vector<512x128xbf16>
    tpu.vector_store %arg4[%c0_8, %c0_9], %15 {strides = array<i32>} : memref<512x128xbf16, #tpu.memory_space<vmem>>, vector<512x128xbf16>,
    return
  }
  func.func @transform_0(%arg0: i32) -> (i32, i32) {
    %c0_i32 = arith.constant 0 : i32
    %c0_i32_0 = arith.constant 0 : i32
    return %arg0, %c0_i32 : i32, i32
  }
  func.func @transform_1(%arg0: i32) -> (i32, i32) {
    %c0_i32 = arith.constant 0 : i32
    %c0_i32_0 = arith.constant 0 : i32
    %c0_i32_1 = arith.constant 0 : i32
    return %c0_i32, %c0_i32_0 : i32, i32
  }
  func.func @transform_2(%arg0: i32) -> (i32, i32) {
    %c0_i32 = arith.constant 0 : i32
    %c0_i32_0 = arith.constant 0 : i32
    %c0_i32_1 = arith.constant 0 : i32
    return %c0_i32, %c0_i32_0 : i32, i32
  }
  func.func @transform_3(%arg0: i32) -> (i32, i32) {
    %c0_i32 = arith.constant 0 : i32
    %c0_i32_0 = arith.constant 0 : i32
    return %arg0, %c0_i32 : i32, i32
  }
}

</mosaic_0001>

<llo_original>
// kernel: tt_conv_forward.1
$region0: #{tt_conv_forward.1}
  #allocation0 [shape = 'u32[]', space=smem, size = 0x4, offset = 0x4, fixed_abs, tag = 'smem constant byte address 0x4 - core index']
  #allocation1 [shape = 'u32[144,128]{1,0:T(1,128)}', space=vmem, size = 0x12000, scoped, tag = 'internal scratch']
  %s0 = inlined_call_operand.vmem [shape: bf16[512,36], index: 0, kind: input, shape index: {}]
  %s1 = inlined_call_operand.vmem [shape: bf16[36,128], index: 1, kind: input, shape index: {}]
  %s2 = inlined_call_operand.vmem [shape: f32[1,128], index: 2, kind: input, shape index: {}]
  %s3 = inlined_call_operand.vmem [shape: bf16[512,128], index: 3, kind: output, shape index: {}]
  %s4 = sld [smem:[#allocation0]]
  $region22: #{tt_conv_forward.1} parent=0
    _
  %s6 = ssub.s32 1, %s4
  %s7 = scalar_select 0, %s6, %s4
  // Predicated region
  $region2: #{tt_conv_forward.1} parent=0 // pred_check
    _
  $region3: #{tt_conv_forward.1} parent=0 // pred_check_branch
    %9 = sbr.rel (0) target = $region5
  $region4: #{tt_conv_forward.1} parent=0 // pred_region
    _
  $region5: #{tt_conv_forward.1} parent=0 // pred_fallthru
    _
  // Predicated region
  $region6: #{tt_conv_forward.1} parent=0 // pred_check
    _
  $region7: #{tt_conv_forward.1} parent=0 // pred_check_branch
    %11 = sbr.rel (0) target = $region9
  $region8: #{tt_conv_forward.1} parent=0 // pred_region
    _
  $region9: #{tt_conv_forward.1} parent=0 // pred_fallthru
    _
  // Predicated region
  $region10: #{tt_conv_forward.1} parent=0 // pred_check
    _
  $region11: #{tt_conv_forward.1} parent=0 // pred_check_branch
    %13 = sbr.rel (0) target = $region13
  $region12: #{tt_conv_forward.1} parent=0 // pred_region
    _
  $region13: #{tt_conv_forward.1} parent=0 // pred_fallthru
    _
  %v15 = vld [vmem:[%s0] sm:$0xf]
  %v16 = vld [vmem:[%s0 + $0x4] sm:$0xf]
  %v17 = vld [vmem:[%s0 + $0x8] sm:$0xf]
  %v18 = vld [vmem:[%s0 + $0xc] sm:$0xf]
  %v19 = vld [vmem:[%s0 + $0x10] sm:$0xf]
  %v20 = vld [vmem:[%s0 + $0x14] sm:$0xf]
  %v21 = vld [vmem:[%s0 + $0x18] sm:$0xf]
  %v22 = vld [vmem:[%s0 + $0x1c] sm:$0xf]
  %v23 = vld [vmem:[%s0 + $0x20] sm:$0xf]
  %v24 = vld [vmem:[%s0 + $0x24] sm:$0xf]
  %v25 = vld [vmem:[%s0 + $0x28] sm:$0xf]
  %v26 = vld [vmem:[%s0 + $0x2c] sm:$0xf]
  %v27 = vld [vmem:[%s0 + $0x30] sm:$0xf]
  %v28 = vld [vmem:[%s0 + $0x34] sm:$0xf]
  %v29 = vld [vmem:[%s0 + $0x38] sm:$0xf]
  %v30 = vld [vmem:[%s0 + $0x3c] sm:$0xf]
  %v31 = vld [vmem:[%s0 + $0x40] sm:$0xf]
  %v32 = vld [vmem:[%s0 + $0x44] sm:$0xf]
  %v33 = vld [vmem:[%s0 + $0x48] sm:$0xf]
  %v34 = vld [vmem:[%s0 + $0x4c] sm:$0xf]
  %v35 = vld [vmem:[%s0 + $0x50] sm:$0xf]
  %v36 = vld [vmem:[%s0 + $0x54] sm:$0xf]
  %v37 = vld [vmem:[%s0 + $0x58] sm:$0xf]
  %v38 = vld [vmem:[%s0 + $0x5c] sm:$0xf]
  %v39 = vld [vmem:[%s0 + $0x60] sm:$0xf]
  %v40 = vld [vmem:[%s0 + $0x64] sm:$0xf]
  %v41 = vld [vmem:[%s0 + $0x68] sm:$0xf]
  %v42 = vld [vmem:[%s0 + $0x6c] sm:$0xf]
  %v43 = vld [vmem:[%s0 + $0x70] sm:$0xf]
  %v44 = vld [vmem:[%s0 + $0x74] sm:$0xf]
  %v45 = vld [vmem:[%s0 + $0x78] sm:$0xf]
  %v46 = vld [vmem:[%s0 + $0x7c] sm:$0xf]
  %v47 = vld [vmem:[%s0 + $0x80] sm:$0xf]
  %v48 = vld [vmem:[%s0 + $0x84] sm:$0xf]
  %v49 = vld [vmem:[%s0 + $0x88] sm:$0xf]
  %v50 = vld [vmem:[%s0 + $0x8c] sm:$0xf]
  %v51 = vld [vmem:[%s0 + $0x90] sm:$0xf]
  %v52 = vld [vmem:[%s0 + $0x94] sm:$0xf]
  %v53 = vld [vmem:[%s0 + $0x98] sm:$0xf]
  %v54 = vld [vmem:[%s0 + $0x9c] sm:$0xf]
  %v55 = vld [vmem:[%s0 + $0xa0] sm:$0xf]
  %v56 = vld [vmem:[%s0 + $0xa4] sm:$0xf]
  %v57 = vld [vmem:[%s0 + $0xa8] sm:$0xf]
  %v58 = vld [vmem:[%s0 + $0xac] sm:$0xf]
  %v59 = vld [vmem:[%s0 + $0xb0] sm:$0xf]
  %v60 = vld [vmem:[%s0 + $0xb4] sm:$0xf]
  %v61 = vld [vmem:[%s0 + $0xb8] sm:$0xf]
  %v62 = vld [vmem:[%s0 + $0xbc] sm:$0xf]
  %v63 = vld [vmem:[%s0 + $0xc0] sm:$0xf]
  %v64 = vld [vmem:[%s0 + $0xc4] sm:$0xf]
  %v65 = vld [vmem:[%s0 + $0xc8] sm:$0xf]
  %v66 = vld [vmem:[%s0 + $0xcc] sm:$0xf]
  %v67 = vld [vmem:[%s0 + $0xd0] sm:$0xf]
  %v68 = vld [vmem:[%s0 + $0xd4] sm:$0xf]
  %v69 = vld [vmem:[%s0 + $0xd8] sm:$0xf]
  %v70 = vld [vmem:[%s0 + $0xdc] sm:$0xf]
  %v71 = vld [vmem:[%s0 + $0xe0] sm:$0xf]
  %v72 = vld [vmem:[%s0 + $0xe4] sm:$0xf]
  %v73 = vld [vmem:[%s0 + $0xe8] sm:$0xf]
  %v74 = vld [vmem:[%s0 + $0xec] sm:$0xf]
  %v75 = vld [vmem:[%s0 + $0xf0] sm:$0xf]
  %v76 = vld [vmem:[%s0 + $0xf4] sm:$0xf]
  %v77 = vld [vmem:[%s0 + $0xf8] sm:$0xf]
  %v78 = vld [vmem:[%s0 + $0xfc] sm:$0xf]
  %v79 = vld [vmem:[%s1] sm:$0xf]
  %v80 = vld [vmem:[%s1 + $0x4] sm:$0xf]
  %v81 = vld [vmem:[%s1 + $0x8] sm:$0xf]
  %v82 = vld [vmem:[%s1 + $0xc] sm:$0xf]
  %v83 = vld [vmem:[%s1 + $0x10] sm:$0x3]
  %v84 = vld [vmem:[%s2] sm:$0x1]
  %v86 = vlaneseq
  %v87 = vshrl.u32 %v86, 7
  %v88 = vsub.s32 0, %v87
  %v89 = vrot.slane %v84, %v88
  %v155 = vunpack.c.l.b16 %v15
  %v156 = vunpack.c.l.b16 %v16
  %v157 = vunpack.c.l.b16 %v17
  %v158 = vunpack.c.l.b16 %v18
  %v159 = vunpack.c.l.b16 %v19
  %v160 = vunpack.c.l.b16 %v20
  %v161 = vunpack.c.l.b16 %v21
  %v162 = vunpack.c.l.b16 %v22
  %v163 = vunpack.c.l.b16 %v23
  %v164 = vunpack.c.l.b16 %v24
  %v165 = vunpack.c.l.b16 %v25
  %v166 = vunpack.c.l.b16 %v26
  %v167 = vunpack.c.l.b16 %v27
  %v168 = vunpack.c.l.b16 %v28
  %v169 = vunpack.c.l.b16 %v29
  %v170 = vunpack.c.l.b16 %v30
  %v171 = vunpack.c.l.b16 %v31
  %v172 = vunpack.c.l.b16 %v32
  %v173 = vunpack.c.l.b16 %v33
  %v174 = vunpack.c.l.b16 %v34
  %v175 = vunpack.c.l.b16 %v35
  %v176 = vunpack.c.l.b16 %v36
  %v177 = vunpack.c.l.b16 %v37
  %v178 = vunpack.c.l.b16 %v38
  %v179 = vunpack.c.l.b16 %v39
  %v180 = vunpack.c.l.b16 %v40
  %v181 = vunpack.c.l.b16 %v41
  %v182 = vunpack.c.l.b16 %v42
  %v183 = vunpack.c.l.b16 %v43
  %v184 = vunpack.c.l.b16 %v44
  %v185 = vunpack.c.l.b16 %v45
  %v186 = vunpack.c.l.b16 %v46
  %v187 = vunpack.c.l.b16 %v47
  %v188 = vunpack.c.l.b16 %v48
  %v189 = vunpack.c.l.b16 %v49
  %v190 = vunpack.c.l.b16 %v50
  %v191 = vunpack.c.l.b16 %v51
  %v192 = vunpack.c.l.b16 %v52
  %v193 = vunpack.c.l.b16 %v53
  %v194 = vunpack.c.l.b16 %v54
  %v195 = vunpack.c.l.b16 %v55
  %v196 = vunpack.c.l.b16 %v56
  %v197 = vunpack.c.l.b16 %v57
  %v198 = vunpack.c.l.b16 %v58
  %v199 = vunpack.c.l.b16 %v59
  %v200 = vunpack.c.l.b16 %v60
  %v201 = vunpack.c.l.b16 %v61
  %v202 = vunpack.c.l.b16 %v62
  %v203 = vunpack.c.l.b16 %v63
  %v204 = vunpack.c.l.b16 %v64
  %v205 = vunpack.c.l.b16 %v65
  %v206 = vunpack.c.l.b16 %v66
  %v207 = vunpack.c.l.b16 %v67
  %v208 = vunpack.c.l.b16 %v68
  %v209 = vunpack.c.l.b16 %v69
  %v210 = vunpack.c.l.b16 %v70
  %v211 = vunpack.c.l.b16 %v71
  %v212 = vunpack.c.l.b16 %v72
  %v213 = vunpack.c.l.b16 %v73
  %v214 = vunpack.c.l.b16 %v74
  %v215 = vunpack.c.l.b16 %v75
  %v216 = vunpack.c.l.b16 %v76
  %v217 = vunpack.c.l.b16 %v77
  %v218 = vunpack.c.l.b16 %v78
  %v219 = vpack.c.b16 %v156, %v155
  %v220 = vpack.c.b16 %v158, %v157
  %v221 = vpack.c.b16 %v160, %v159
  %v222 = vpack.c.b16 %v162, %v161
  %v223 = vpack.c.b16 %v164, %v163
  %v224 = vpack.c.b16 %v166, %v165
  %v225 = vpack.c.b16 %v168, %v167
  %v226 = vpack.c.b16 %v170, %v169
  %v227 = vpack.c.b16 %v172, %v171
  %v228 = vpack.c.b16 %v174, %v173
  %v229 = vpack.c.b16 %v176, %v175
  %v230 = vpack.c.b16 %v178, %v177
  %v231 = vpack.c.b16 %v180, %v179
  %v232 = vpack.c.b16 %v182, %v181
  %v233 = vpack.c.b16 %v184, %v183
  %v234 = vpack.c.b16 %v186, %v185
  %v235 = vpack.c.b16 %v188, %v187
  %v236 = vpack.c.b16 %v190, %v189
  %v237 = vpack.c.b16 %v192, %v191
  %v238 = vpack.c.b16 %v194, %v193
  %v239 = vpack.c.b16 %v196, %v195
  %v240 = vpack.c.b16 %v198, %v197
  %v241 = vpack.c.b16 %v200, %v199
  %v242 = vpack.c.b16 %v202, %v201
  %v243 = vpack.c.b16 %v204, %v203
  %v244 = vpack.c.b16 %v206, %v205
  %v245 = vpack.c.b16 %v208, %v207
  %v246 = vpack.c.b16 %v210, %v209
  %v247 = vpack.c.b16 %v212, %v211
  %v248 = vpack.c.b16 %v214, %v213
  %v249 = vpack.c.b16 %v216, %v215
  %v250 = vpack.c.b16 %v218, %v217
  %v256 = vunpack.c.l.b16 %v79
  %v257 = vunpack.c.l.b16 %v80
  %v258 = vunpack.c.l.b16 %v81
  %v259 = vunpack.c.l.b16 %v82
  %v260 = vunpack.c.l.b16 %v83
  %v261 = vpack.c.b16 %v257, %v256
  %v262 = vpack.c.b16 %v259, %v258
  %v263 = vpack.c.b16 %v260, %v260
  %vm266 = vcmask 293888
  %v268 = vsel %vm266, %v219, 0
  %v271 = vsel %vm266, %v220, 0
  %v274 = vsel %vm266, %v221, 0
  %v277 = vsel %vm266, %v222, 0
  %v280 = vsel %vm266, %v223, 0
  %v283 = vsel %vm266, %v224, 0
  %v286 = vsel %vm266, %v225, 0
  %v289 = vsel %vm266, %v226, 0
  %v292 = vsel %vm266, %v227, 0
  %v295 = vsel %vm266, %v228, 0
  %v298 = vsel %vm266, %v229, 0
  %v301 = vsel %vm266, %v230, 0
  %v304 = vsel %vm266, %v231, 0
  %v307 = vsel %vm266, %v232, 0
  %v310 = vsel %vm266, %v233, 0
  %v313 = vsel %vm266, %v234, 0
  %v316 = vsel %vm266, %v235, 0
  %v319 = vsel %vm266, %v236, 0
  %v322 = vsel %vm266, %v237, 0
  %v325 = vsel %vm266, %v238, 0
  %v328 = vsel %vm266, %v239, 0
  %v331 = vsel %vm266, %v240, 0
  %v334 = vsel %vm266, %v241, 0
  %v337 = vsel %vm266, %v242, 0
  %v340 = vsel %vm266, %v243, 0
  %v343 = vsel %vm266, %v244, 0
  %v346 = vsel %vm266, %v245, 0
  %v349 = vsel %vm266, %v246, 0
  %v352 = vsel %vm266, %v247, 0
  %v355 = vsel %vm266, %v248, 0
  %v358 = vsel %vm266, %v249, 0
  %v361 = vsel %vm266, %v250, 0
  %vm363 = vcmask 1041408
  %v365 = vsel %vm363, %v263, 0
  %367 = vmatprep.subr.bf16.mxu0 0
  %368 = vmatpush1.bf16.msra.mxu0 %v261
  %369 = vmatprep.subr.bf16.mxu0 0
  %370 = vmatpush1.bf16.msra.mxu0 %v262
  %371 = vmatprep.subr.bf16.mxu0 0
  %372 = vmatpush1.bf16.msra.mxu0 %v365
  %373 = vmatprep.subr.bf16.mxu0 0
  %374 = vmatpush1.bf16.msra.mxu0 0
  %375 = vmatprep.subr.bf16.mxu0 0
  %376 = vmatpush1.bf16.msra.mxu0 0
  %377 = vmatprep.subr.bf16.mxu0 0
  %378 = vmatpush1.bf16.msra.mxu0 0
  %379 = vmatprep.subr.bf16.mxu0 0
  %380 = vmatpush1.bf16.msra.mxu0 0
  %381 = vmatprep.subr.bf16.mxu0 0
  %382 = vmatpush1.bf16.msra.mxu0 0
  %383 = vmatprep.subr.bf16.mxu0 0
  %384 = vmatpush1.bf16.msra.mxu0 0
  %385 = vmatprep.subr.bf16.mxu0 0
  %386 = vmatpush1.bf16.msra.mxu0 0
  %387 = vmatprep.subr.bf16.mxu0 0
  %388 = vmatpush1.bf16.msra.mxu0 0
  %389 = vmatprep.subr.bf16.mxu0 0
  %390 = vmatpush1.bf16.msra.mxu0 0
  %391 = vmatprep.subr.bf16.mxu0 0
  %392 = vmatpush1.bf16.msra.mxu0 0
  %393 = vmatprep.subr.bf16.mxu0 0
  %394 = vmatpush1.bf16.msra.mxu0 0
  %395 = vmatprep.subr.bf16.mxu0 0
  %396 = vmatpush1.bf16.msra.mxu0 0
  %397 = vmatprep.subr.bf16.mxu0 0
  %398 = vmatpush1.bf16.msra.mxu0 0
  %399 = vmatprep.mubr.bf16.mxu0 0
  %400 = vmatmul.mubr.bf16.gmra.mrb[0].mxu0 %v268
  %v401 = vpop.f32.mrb[0].mxu0
  %v402 = vadd.f32 %v89, %v401
  %v403 = vpop.f32.mrb[0].mxu0
  %v404 = vpop.f32.mrb[0].mxu0
  %v405 = vadd.f32 %v89, %v404
  %v406 = vpop.f32.mrb[0].mxu0
  %407 = vmatprep.mubr.bf16.mxu0 0
  %408 = vmatmul.mubr.bf16.gmra.mrb[0].mxu0 %v271
  %v409 = vpop.f32.mrb[0].mxu0
  %v410 = vadd.f32 %v89, %v409
  %v411 = vpop.f32.mrb[0].mxu0
  %v412 = vpop.f32.mrb[0].mxu0
  %v413 = vadd.f32 %v89, %v412
  %v414 = vpop.f32.mrb[0].mxu0
  %415 = vmatprep.mubr.bf16.mxu0 0
  %416 = vmatmul.mubr.bf16.gmra.mrb[0].mxu0 %v274
  %v417 = vpop.f32.mrb[0].mxu0
  %v418 = vadd.f32 %v89, %v417
  %v419 = vpop.f32.mrb[0].mxu0
  %v420 = vpop.f32.mrb[0].mxu0
  %v421 = vadd.f32 %v89, %v420
  %v422 = vpop.f32.mrb[0].mxu0
  %423 = vmatprep.mubr.bf16.mxu0 0
  %424 = vmatmul.mubr.bf16.gmra.mrb[0].mxu0 %v277
  %v425 = vpop.f32.mrb[0].mxu0
  %v426 = vadd.f32 %v89, %v425
  %v427 = vpop.f32.mrb[0].mxu0
  %v428 = vpop.f32.mrb[0].mxu0
  %v429 = vadd.f32 %v89, %v428
  %v430 = vpop.f32.mrb[0].mxu0
  %431 = vmatprep.mubr.bf16.mxu0 0
  %432 = vmatmul.mubr.bf16.gmra.mrb[0].mxu0 %v280
  %v433 = vpop.f32.mrb[0].mxu0
  %v434 = vadd.f32 %v89, %v433
  %v435 = vpop.f32.mrb[0].mxu0
  %v436 = vpop.f32.mrb[0].mxu0
  %v437 = vadd.f32 %v89, %v436
  %v438 = vpop.f32.mrb[0].mxu0
  %439 = vmatprep.mubr.bf16.mxu0 0
  %440 = vmatmul.mubr.bf16.gmra.mrb[0].mxu0 %v283
  %v441 = vpop.f32.mrb[0].mxu0
  %v442 = vadd.f32 %v89, %v441
  %v443 = vpop.f32.mrb[0].mxu0
  %v444 = vpop.f32.mrb[0].mxu0
  %v445 = vadd.f32 %v89, %v444
  %v446 = vpop.f32.mrb[0].mxu0
  %447 = vmatprep.mubr.bf16.mxu0 0
  %448 = vmatmul.mubr.bf16.gmra.mrb[0].mxu0 %v286
  %v449 = vpop.f32.mrb[0].mxu0
  %v450 = vadd.f32 %v89, %v449
  %v451 = vpop.f32.mrb[0].mxu0
  %v452 = vpop.f32.mrb[0].mxu0
  %v453 = vadd.f32 %v89, %v452
  %v454 = vpop.f32.mrb[0].mxu0
  %455 = vmatprep.mubr.bf16.mxu0 0
  %456 = vmatmul.mubr.bf16.gmra.mrb[0].mxu0 %v289
  %v457 = vpop.f32.mrb[0].mxu0
  %v458 = vadd.f32 %v89, %v457
  %v459 = vpop.f32.mrb[0].mxu0
  %v460 = vpop.f32.mrb[0].mxu0
  %v461 = vadd.f32 %v89, %v460
  %v462 = vpop.f32.mrb[0].mxu0
  %463 = vmatprep.mubr.bf16.mxu0 0
  %464 = vmatmul.mubr.bf16.gmra.mrb[0].mxu0 %v292
  %v465 = vpop.f32.mrb[0].mxu0
  %v466 = vadd.f32 %v89, %v465
  %v467 = vpop.f32.mrb[0].mxu0
  %v468 = vpop.f32.mrb[0].mxu0
  %v469 = vadd.f32 %v89, %v468
  %v470 = vpop.f32.mrb[0].mxu0
  %471 = vmatprep.mubr.bf16.mxu0 0
  %472 = vmatmul.mubr.bf16.gmra.mrb[0].mxu0 %v295
  %v473 = vpop.f32.mrb[0].mxu0
  %v474 = vadd.f32 %v89, %v473
  %v475 = vpop.f32.mrb[0].mxu0
  %v476 = vpop.f32.mrb[0].mxu0
  %v477 = vadd.f32 %v89, %v476
  %v478 = vpop.f32.mrb[0].mxu0
  %479 = vmatprep.mubr.bf16.mxu0 0
  %480 = vmatmul.mubr.bf16.gmra.mrb[0].mxu0 %v298
  %v481 = vpop.f32.mrb[0].mxu0
  %v482 = vadd.f32 %v89, %v481
  %v483 = vpop.f32.mrb[0].mxu0
  %v484 = vpop.f32.mrb[0].mxu0
  %v485 = vadd.f32 %v89, %v484
  %v486 = vpop.f32.mrb[0].mxu0
  %487 = vmatprep.mubr.bf16.mxu0 0
  %488 = vmatmul.mubr.bf16.gmra.mrb[0].mxu0 %v301
  %v489 = vpop.f32.mrb[0].mxu0
  %v490 = vadd.f32 %v89, %v489
  %v491 = vpop.f32.mrb[0].mxu0
  %v492 = vpop.f32.mrb[0].mxu0
  %v493 = vadd.f32 %v89, %v492
  %v494 = vpop.f32.mrb[0].mxu0
  %495 = vmatprep.mubr.bf16.mxu0 0
  %496 = vmatmul.mubr.bf16.gmra.mrb[0].mxu0 %v304
  %v497 = vpop.f32.mrb[0].mxu0
  %v498 = vadd.f32 %v89, %v497
  %v499 = vpop.f32.mrb[0].mxu0
  %v500 = vpop.f32.mrb[0].mxu0
  %v501 = vadd.f32 %v89, %v500
  %v502 = vpop.f32.mrb[0].mxu0
  %503 = vmatprep.mubr.bf16.mxu0 0
  %504 = vmatmul.mubr.bf16.gmra.mrb[0].mxu0 %v307
  %v505 = vpop.f32.mrb[0].mxu0
  %v506 = vadd.f32 %v89, %v505
  %v507 = vpop.f32.mrb[0].mxu0
  %v508 = vpop.f32.mrb[0].mxu0
  %v509 = vadd.f32 %v89, %v508
  %v510 = vpop.f32.mrb[0].mxu0
  %511 = vmatprep.mubr.bf16.mxu0 0
  %512 = vmatmul.mubr.bf16.gmra.mrb[0].mxu0 %v310
  %v513 = vpop.f32.mrb[0].mxu0
  %v514 = vadd.f32 %v89, %v513
  %v515 = vpop.f32.mrb[0].mxu0
  %v516 = vpop.f32.mrb[0].mxu0
  %v517 = vadd.f32 %v89, %v516
  %v518 = vpop.f32.mrb[0].mxu0
  %519 = vmatprep.mubr.bf16.mxu0 0
  %520 = vmatmul.mubr.bf16.gmra.mrb[0].mxu0 %v313
  %v521 = vpop.f32.mrb[0].mxu0
  %v522 = vadd.f32 %v89, %v521
  %v523 = vpop.f32.mrb[0].mxu0
  %v524 = vpop.f32.mrb[0].mxu0
  %v525 = vadd.f32 %v89, %v524
  %v526 = vpop.f32.mrb[0].mxu0
  %527 = vmatprep.mubr.bf16.mxu0 0
  %528 = vmatmul.mubr.bf16.gmra.mrb[0].mxu0 %v316
  %v529 = vpop.f32.mrb[0].mxu0
  %v530 = vadd.f32 %v89, %v529
  %v531 = vpop.f32.mrb[0].mxu0
  %v532 = vpop.f32.mrb[0].mxu0
  %v533 = vadd.f32 %v89, %v532
  %v534 = vpop.f32.mrb[0].mxu0
  %535 = vmatprep.mubr.bf16.mxu0 0
  %536 = vmatmul.mubr.bf16.gmra.mrb[0].mxu0 %v319
  %v537 = vpop.f32.mrb[0].mxu0
  %v538 = vadd.f32 %v89, %v537
  %v539 = vpop.f32.mrb[0].mxu0
  %v540 = vpop.f32.mrb[0].mxu0
  %v541 = vadd.f32 %v89, %v540
  %v542 = vpop.f32.mrb[0].mxu0
  %543 = vmatprep.mubr.bf16.mxu0 0
  %544 = vmatmul.mubr.bf16.gmra.mrb[0].mxu0 %v322
  %v545 = vpop.f32.mrb[0].mxu0
  %v546 = vadd.f32 %v89, %v545
  %v547 = vpop.f32.mrb[0].mxu0
  %v548 = vpop.f32.mrb[0].mxu0
  %v549 = vadd.f32 %v89, %v548
  %v550 = vpop.f32.mrb[0].mxu0
  %551 = vmatprep.mubr.bf16.mxu0 0
  %552 = vmatmul.mubr.bf16.gmra.mrb[0].mxu0 %v325
  %v553 = vpop.f32.mrb[0].mxu0
  %v554 = vadd.f32 %v89, %v553
  %v555 = vpop.f32.mrb[0].mxu0
  %v556 = vpop.f32.mrb[0].mxu0
  %v557 = vadd.f32 %v89, %v556
  %v558 = vpop.f32.mrb[0].mxu0
  %559 = vmatprep.mubr.bf16.mxu0 0
  %560 = vmatmul.mubr.bf16.gmra.mrb[0].mxu0 %v328
  %v561 = vpop.f32.mrb[0].mxu0
  %v562 = vadd.f32 %v89, %v561
  %v563 = vpop.f32.mrb[0].mxu0
  %v564 = vpop.f32.mrb[0].mxu0
  %v565 = vadd.f32 %v89, %v564
  %v566 = vpop.f32.mrb[0].mxu0
  %567 = vmatprep.mubr.bf16.mxu0 0
  %568 = vmatmul.mubr.bf16.gmra.mrb[0].mxu0 %v331
  %v569 = vpop.f32.mrb[0].mxu0
  %v570 = vadd.f32 %v89, %v569
  %v571 = vpop.f32.mrb[0].mxu0
  %v572 = vpop.f32.mrb[0].mxu0
  %v573 = vadd.f32 %v89, %v572
  %v574 = vpop.f32.mrb[0].mxu0
  %575 = vmatprep.mubr.bf16.mxu0 0
  %576 = vmatmul.mubr.bf16.gmra.mrb[0].mxu0 %v334
  %v577 = vpop.f32.mrb[0].mxu0
  %v578 = vadd.f32 %v89, %v577
  %v579 = vpop.f32.mrb[0].mxu0
  %v580 = vpop.f32.mrb[0].mxu0
  %v581 = vadd.f32 %v89, %v580
  %v582 = vpop.f32.mrb[0].mxu0
  %583 = vmatprep.mubr.bf16.mxu0 0
  %584 = vmatmul.mubr.bf16.gmra.mrb[0].mxu0 %v337
  %v585 = vpop.f32.mrb[0].mxu0
  %v586 = vadd.f32 %v89, %v585
  %v587 = vpop.f32.mrb[0].mxu0
  %v588 = vpop.f32.mrb[0].mxu0
  %v589 = vadd.f32 %v89, %v588
  %v590 = vpop.f32.mrb[0].mxu0
  %591 = vmatprep.mubr.bf16.mxu0 0
  %592 = vmatmul.mubr.bf16.gmra.mrb[0].mxu0 %v340
  %v593 = vpop.f32.mrb[0].mxu0
  %v594 = vadd.f32 %v89, %v593
  %v595 = vpop.f32.mrb[0].mxu0
  %v596 = vpop.f32.mrb[0].mxu0
  %v597 = vadd.f32 %v89, %v596
  %v598 = vpop.f32.mrb[0].mxu0
  %599 = vmatprep.mubr.bf16.mxu0 0
  %600 = vmatmul.mubr.bf16.gmra.mrb[0].mxu0 %v343
  %v601 = vpop.f32.mrb[0].mxu0
  %v602 = vadd.f32 %v89, %v601
  %v603 = vpop.f32.mrb[0].mxu0
  %v604 = vpop.f32.mrb[0].mxu0
  %v605 = vadd.f32 %v89, %v604
  %v606 = vpop.f32.mrb[0].mxu0
  %607 = vmatprep.mubr.bf16.mxu0 0
  %608 = vmatmul.mubr.bf16.gmra.mrb[0].mxu0 %v346
  %v609 = vpop.f32.mrb[0].mxu0
  %v610 = vadd.f32 %v89, %v609
  %v611 = vpop.f32.mrb[0].mxu0
  %v612 = vpop.f32.mrb[0].mxu0
  %v613 = vadd.f32 %v89, %v612
  %v614 = vpop.f32.mrb[0].mxu0
  %615 = vmatprep.mubr.bf16.mxu0 0
  %616 = vmatmul.mubr.bf16.gmra.mrb[0].mxu0 %v349
  %v617 = vpop.f32.mrb[0].mxu0
  %v618 = vadd.f32 %v89, %v617
  %v619 = vpop.f32.mrb[0].mxu0
  %v620 = vpop.f32.mrb[0].mxu0
  %v621 = vadd.f32 %v89, %v620
  %v622 = vpop.f32.mrb[0].mxu0
  %623 = vmatprep.mubr.bf16.mxu0 0
  %624 = vmatmul.mubr.bf16.gmra.mrb[0].mxu0 %v352
  %v625 = vpop.f32.mrb[0].mxu0
  %v626 = vadd.f32 %v89, %v625
  %v627 = vpop.f32.mrb[0].mxu0
  %v628 = vpop.f32.mrb[0].mxu0
  %v629 = vadd.f32 %v89, %v628
  %v630 = vpop.f32.mrb[0].mxu0
  %631 = vmatprep.mubr.bf16.mxu0 0
  %632 = vmatmul.mubr.bf16.gmra.mrb[0].mxu0 %v355
  %v633 = vpop.f32.mrb[0].mxu0
  %v634 = vadd.f32 %v89, %v633
  %v635 = vpop.f32.mrb[0].mxu0
  %v636 = vpop.f32.mrb[0].mxu0
  %v637 = vadd.f32 %v89, %v636
  %v638 = vpop.f32.mrb[0].mxu0
  %639 = vmatprep.mubr.bf16.mxu0 0
  %640 = vmatmul.mubr.bf16.gmra.mrb[0].mxu0 %v358
  %v641 = vpop.f32.mrb[0].mxu0
  %v642 = vadd.f32 %v89, %v641
  %v643 = vpop.f32.mrb[0].mxu0
  %v644 = vpop.f32.mrb[0].mxu0
  %v645 = vadd.f32 %v89, %v644
  %v646 = vpop.f32.mrb[0].mxu0
  %647 = vmatprep.mubr.bf16.mxu0 0
  %648 = vmatmul.mubr.bf16.gmra.mrb[0].mxu0 %v361
  %v649 = vpop.f32.mrb[0].mxu0
  %v650 = vadd.f32 %v89, %v649
  %v651 = vpop.f32.mrb[0].mxu0
  %v652 = vpop.f32.mrb[0].mxu0
  %v653 = vadd.f32 %v89, %v652
  %v654 = vpop.f32.mrb[0].mxu0
  %655 = vdwg.mxu0
  %v656 = vsub.f32 0.0, %v402
  %v657 = vsub.f32 0.0, %v405
  %v658 = vsub.f32 0.0, %v410
  %v659 = vsub.f32 0.0, %v413
  %v660 = vsub.f32 0.0, %v418
  %v661 = vsub.f32 0.0, %v421
  %v662 = vsub.f32 0.0, %v426
  %v663 = vsub.f32 0.0, %v429
  %v664 = vsub.f32 0.0, %v434
  %v665 = vsub.f32 0.0, %v437
  %v666 = vsub.f32 0.0, %v442
  %v667 = vsub.f32 0.0, %v445
  %v668 = vsub.f32 0.0, %v450
  %v669 = vsub.f32 0.0, %v453
  %v670 = vsub.f32 0.0, %v458
  %v671 = vsub.f32 0.0, %v461
  %v672 = vsub.f32 0.0, %v466
  %v673 = vsub.f32 0.0, %v469
  %v674 = vsub.f32 0.0, %v474
  %v675 = vsub.f32 0.0, %v477
  %v676 = vsub.f32 0.0, %v482
  %v677 = vsub.f32 0.0, %v485
  %v678 = vsub.f32 0.0, %v490
  %v679 = vsub.f32 0.0, %v493
  %v680 = vsub.f32 0.0, %v498
  %v681 = vsub.f32 0.0, %v501
  %v682 = vsub.f32 0.0, %v506
  %v683 = vsub.f32 0.0, %v509
  %v684 = vsub.f32 0.0, %v514
  %v685 = vsub.f32 0.0, %v517
  %v686 = vsub.f32 0.0, %v522
  %v687 = vsub.f32 0.0, %v525
  %v688 = vsub.f32 0.0, %v530
  %v689 = vsub.f32 0.0, %v533
  %v690 = vsub.f32 0.0, %v538
  %v691 = vsub.f32 0.0, %v541
  %v692 = vsub.f32 0.0, %v546
  %v693 = vsub.f32 0.0, %v549
  %v694 = vsub.f32 0.0, %v554
  %v695 = vsub.f32 0.0, %v557
  %v696 = vsub.f32 0.0, %v562
  %v697 = vsub.f32 0.0, %v565
  %v698 = vsub.f32 0.0, %v570
  %v699 = vsub.f32 0.0, %v573
  %v700 = vsub.f32 0.0, %v578
  %v701 = vsub.f32 0.0, %v581
  %v702 = vsub.f32 0.0, %v586
  %v703 = vsub.f32 0.0, %v589
  %v704 = vsub.f32 0.0, %v594
  %v705 = vsub.f32 0.0, %v597
  %v706 = vsub.f32 0.0, %v602
  %v707 = vsub.f32 0.0, %v605
  %v708 = vsub.f32 0.0, %v610
  %v709 = vsub.f32 0.0, %v613
  %v710 = vsub.f32 0.0, %v618
  %v711 = vsub.f32 0.0, %v621
  %v712 = vsub.f32 0.0, %v626
  %v713 = vsub.f32 0.0, %v629
  %v714 = vsub.f32 0.0, %v634
  %v715 = vsub.f32 0.0, %v637
  %v716 = vsub.f32 0.0, %v642
  %v717 = vsub.f32 0.0, %v645
  %v718 = vsub.f32 0.0, %v650
  %v719 = vsub.f32 0.0, %v653
  %v720 = vmin.f32 %v656, 60.0
  %v721 = vmin.f32 %v657, 60.0
  %v722 = vmin.f32 %v658, 60.0
  %v723 = vmin.f32 %v659, 60.0
  %v724 = vmin.f32 %v660, 60.0
  %v725 = vmin.f32 %v661, 60.0
  %v726 = vmin.f32 %v662, 60.0
  %v727 = vmin.f32 %v663, 60.0
  %v728 = vmin.f32 %v664, 60.0
  %v729 = vmin.f32 %v665, 60.0
  %v730 = vmin.f32 %v666, 60.0
  %v731 = vmin.f32 %v667, 60.0
  %v732 = vmin.f32 %v668, 60.0
  %v733 = vmin.f32 %v669, 60.0
  %v734 = vmin.f32 %v670, 60.0
  %v735 = vmin.f32 %v671, 60.0
  %v736 = vmin.f32 %v672, 60.0
  %v737 = vmin.f32 %v673, 60.0
  %v738 = vmin.f32 %v674, 60.0
  %v739 = vmin.f32 %v675, 60.0
  %v740 = vmin.f32 %v676, 60.0
  %v741 = vmin.f32 %v677, 60.0
  %v742 = vmin.f32 %v678, 60.0
  %v743 = vmin.f32 %v679, 60.0
  %v744 = vmin.f32 %v680, 60.0
  %v745 = vmin.f32 %v681, 60.0
  %v746 = vmin.f32 %v682, 60.0
  %v747 = vmin.f32 %v683, 60.0
  %v748 = vmin.f32 %v684, 60.0
  %v749 = vmin.f32 %v685, 60.0
  %v750 = vmin.f32 %v686, 60.0
  %v751 = vmin.f32 %v687, 60.0
  %v752 = vmin.f32 %v688, 60.0
  %v753 = vmin.f32 %v689, 60.0
  %v754 = vmin.f32 %v690, 60.0
  %v755 = vmin.f32 %v691, 60.0
  %v756 = vmin.f32 %v692, 60.0
  %v757 = vmin.f32 %v693, 60.0
  %v758 = vmin.f32 %v694, 60.0
  %v759 = vmin.f32 %v695, 60.0
  %v760 = vmin.f32 %v696, 60.0
  %v761 = vmin.f32 %v697, 60.0
  %v762 = vmin.f32 %v698, 60.0
  %v763 = vmin.f32 %v699, 60.0
  %v764 = vmin.f32 %v700, 60.0
  %v765 = vmin.f32 %v701, 60.0
  %v766 = vmin.f32 %v702, 60.0
  %v767 = vmin.f32 %v703, 60.0
  %v768 = vmin.f32 %v704, 60.0
  %v769 = vmin.f32 %v705, 60.0
  %v770 = vmin.f32 %v706, 60.0
  %v771 = vmin.f32 %v707, 60.0
  %v772 = vmin.f32 %v708, 60.0
  %v773 = vmin.f32 %v709, 60.0
  %v774 = vmin.f32 %v710, 60.0
  %v775 = vmin.f32 %v711, 60.0
  %v776 = vmin.f32 %v712, 60.0
  %v777 = vmin.f32 %v713, 60.0
  %v778 = vmin.f32 %v714, 60.0
  %v779 = vmin.f32 %v715, 60.0
  %v780 = vmin.f32 %v716, 60.0
  %v781 = vmin.f32 %v717, 60.0
  %v782 = vmin.f32 %v718, 60.0
  %v783 = vmin.f32 %v719, 60.0
  %v784 = vmul.f32 %v720, 1.442695
  %v785 = vpow.pop %v784
  %v786 = vmul.f32 %v721, 1.442695
  %v787 = vpow.pop %v786
  %v788 = vmul.f32 %v722, 1.442695
  %v789 = vpow.pop %v788
  %v790 = vmul.f32 %v723, 1.442695
  %v791 = vpow.pop %v790
  %v792 = vmul.f32 %v724, 1.442695
  %v793 = vpow.pop %v792
  %v794 = vmul.f32 %v725, 1.442695
  %v795 = vpow.pop %v794
  %v796 = vmul.f32 %v726, 1.442695
  %v797 = vpow.pop %v796
  %v798 = vmul.f32 %v727, 1.442695
  %v799 = vpow.pop %v798
  %v800 = vmul.f32 %v728, 1.442695
  %v801 = vpow.pop %v800
  %v802 = vmul.f32 %v729, 1.442695
  %v803 = vpow.pop %v802
  %v804 = vmul.f32 %v730, 1.442695
  %v805 = vpow.pop %v804
  %v806 = vmul.f32 %v731, 1.442695
  %v807 = vpow.pop %v806
  %v808 = vmul.f32 %v732, 1.442695
  %v809 = vpow.pop %v808
  %v810 = vmul.f32 %v733, 1.442695
  %v811 = vpow.pop %v810
  %v812 = vmul.f32 %v734, 1.442695
  %v813 = vpow.pop %v812
  %v814 = vmul.f32 %v735, 1.442695
  %v815 = vpow.pop %v814
  %v816 = vmul.f32 %v736, 1.442695
  %v817 = vpow.pop %v816
  %v818 = vmul.f32 %v737, 1.442695
  %v819 = vpow.pop %v818
  %v820 = vmul.f32 %v738, 1.442695
  %v821 = vpow.pop %v820
  %v822 = vmul.f32 %v739, 1.442695
  %v823 = vpow.pop %v822
  %v824 = vmul.f32 %v740, 1.442695
  %v825 = vpow.pop %v824
  %v826 = vmul.f32 %v741, 1.442695
  %v827 = vpow.pop %v826
  %v828 = vmul.f32 %v742, 1.442695
  %v829 = vpow.pop %v828
  %v830 = vmul.f32 %v743, 1.442695
  %v831 = vpow.pop %v830
  %v832 = vmul.f32 %v744, 1.442695
  %v833 = vpow.pop %v832
  %v834 = vmul.f32 %v745, 1.442695
  %v835 = vpow.pop %v834
  %v836 = vmul.f32 %v746, 1.442695
  %v837 = vpow.pop %v836
  %v838 = vmul.f32 %v747, 1.442695
  %v839 = vpow.pop %v838
  %v840 = vmul.f32 %v748, 1.442695
  %v841 = vpow.pop %v840
  %v842 = vmul.f32 %v749, 1.442695
  %v843 = vpow.pop %v842
  %v844 = vmul.f32 %v750, 1.442695
  %v845 = vpow.pop %v844
  %v846 = vmul.f32 %v751, 1.442695
  %v847 = vpow.pop %v846
  %v848 = vmul.f32 %v752, 1.442695
  %v849 = vpow.pop %v848
  %v850 = vmul.f32 %v753, 1.442695
  %v851 = vpow.pop %v850
  %v852 = vmul.f32 %v754, 1.442695
  %v853 = vpow.pop %v852
  %v854 = vmul.f32 %v755, 1.442695
  %v855 = vpow.pop %v854
  %v856 = vmul.f32 %v756, 1.442695
  %v857 = vpow.pop %v856
  %v858 = vmul.f32 %v757, 1.442695
  %v859 = vpow.pop %v858
  %v860 = vmul.f32 %v758, 1.442695
  %v861 = vpow.pop %v860
  %v862 = vmul.f32 %v759, 1.442695
  %v863 = vpow.pop %v862
  %v864 = vmul.f32 %v760, 1.442695
  %v865 = vpow.pop %v864
  %v866 = vmul.f32 %v761, 1.442695
  %v867 = vpow.pop %v866
  %v868 = vmul.f32 %v762, 1.442695
  %v869 = vpow.pop %v868
  %v870 = vmul.f32 %v763, 1.442695
  %v871 = vpow.pop %v870
  %v872 = vmul.f32 %v764, 1.442695
  %v873 = vpow.pop %v872
  %v874 = vmul.f32 %v765, 1.442695
  %v875 = vpow.pop %v874
  %v876 = vmul.f32 %v766, 1.442695
  %v877 = vpow.pop %v876
  %v878 = vmul.f32 %v767, 1.442695
  %v879 = vpow.pop %v878
  %v880 = vmul.f32 %v768, 1.442695
  %v881 = vpow.pop %v880
  %v882 = vmul.f32 %v769, 1.442695
  %v883 = vpow.pop %v882
  %v884 = vmul.f32 %v770, 1.442695
  %v885 = vpow.pop %v884
  %v886 = vmul.f32 %v771, 1.442695
  %v887 = vpow.pop %v886
  %v888 = vmul.f32 %v772, 1.442695
  %v889 = vpow.pop %v888
  %v890 = vmul.f32 %v773, 1.442695
  %v891 = vpow.pop %v890
  %v892 = vmul.f32 %v774, 1.442695
  %v893 = vpow.pop %v892
  %v894 = vmul.f32 %v775, 1.442695
  %v895 = vpow.pop %v894
  %v896 = vmul.f32 %v776, 1.442695
  %v897 = vpow.pop %v896
  %v898 = vmul.f32 %v777, 1.442695
  %v899 = vpow.pop %v898
  %v900 = vmul.f32 %v778, 1.442695
  %v901 = vpow.pop %v900
  %v902 = vmul.f32 %v779, 1.442695
  %v903 = vpow.pop %v902
  %v904 = vmul.f32 %v780, 1.442695
  %v905 = vpow.pop %v904
  %v906 = vmul.f32 %v781, 1.442695
  %v907 = vpow.pop %v906
  %v908 = vmul.f32 %v782, 1.442695
  %v909 = vpow.pop %v908
  %v910 = vmul.f32 %v783, 1.442695
  %v911 = vpow.pop %v910
  %v912 = vadd.f32 %v785, 1.0
  %v913 = vadd.f32 %v787, 1.0
  %v914 = vadd.f32 %v789, 1.0
  %v915 = vadd.f32 %v791, 1.0
  %v916 = vadd.f32 %v793, 1.0
  %v917 = vadd.f32 %v795, 1.0
  %v918 = vadd.f32 %v797, 1.0
  %v919 = vadd.f32 %v799, 1.0
  %v920 = vadd.f32 %v801, 1.0
  %v921 = vadd.f32 %v803, 1.0
  %v922 = vadd.f32 %v805, 1.0
  %v923 = vadd.f32 %v807, 1.0
  %v924 = vadd.f32 %v809, 1.0
  %v925 = vadd.f32 %v811, 1.0
  %v926 = vadd.f32 %v813, 1.0
  %v927 = vadd.f32 %v815, 1.0
  %v928 = vadd.f32 %v817, 1.0
  %v929 = vadd.f32 %v819, 1.0
  %v930 = vadd.f32 %v821, 1.0
  %v931 = vadd.f32 %v823, 1.0
  %v932 = vadd.f32 %v825, 1.0
  %v933 = vadd.f32 %v827, 1.0
  %v934 = vadd.f32 %v829, 1.0
  %v935 = vadd.f32 %v831, 1.0
  %v936 = vadd.f32 %v833, 1.0
  %v937 = vadd.f32 %v835, 1.0
  %v938 = vadd.f32 %v837, 1.0
  %v939 = vadd.f32 %v839, 1.0
  %v940 = vadd.f32 %v841, 1.0
  %v941 = vadd.f32 %v843, 1.0
  %v942 = vadd.f32 %v845, 1.0
  %v943 = vadd.f32 %v847, 1.0
  %v944 = vadd.f32 %v849, 1.0
  %v945 = vadd.f32 %v851, 1.0
  %v946 = vadd.f32 %v853, 1.0
  %v947 = vadd.f32 %v855, 1.0
  %v948 = vadd.f32 %v857, 1.0
  %v949 = vadd.f32 %v859, 1.0
  %v950 = vadd.f32 %v861, 1.0
  %v951 = vadd.f32 %v863, 1.0
  %v952 = vadd.f32 %v865, 1.0
  %v953 = vadd.f32 %v867, 1.0
  %v954 = vadd.f32 %v869, 1.0
  %v955 = vadd.f32 %v871, 1.0
  %v956 = vadd.f32 %v873, 1.0
  %v957 = vadd.f32 %v875, 1.0
  %v958 = vadd.f32 %v877, 1.0
  %v959 = vadd.f32 %v879, 1.0
  %v960 = vadd.f32 %v881, 1.0
  %v961 = vadd.f32 %v883, 1.0
  %v962 = vadd.f32 %v885, 1.0
  %v963 = vadd.f32 %v887, 1.0
  %v964 = vadd.f32 %v889, 1.0
  %v965 = vadd.f32 %v891, 1.0
  %v966 = vadd.f32 %v893, 1.0
  %v967 = vadd.f32 %v895, 1.0
  %v968 = vadd.f32 %v897, 1.0
  %v969 = vadd.f32 %v899, 1.0
  %v970 = vadd.f32 %v901, 1.0
  %v971 = vadd.f32 %v903, 1.0
  %v972 = vadd.f32 %v905, 1.0
  %v973 = vadd.f32 %v907, 1.0
  %v974 = vadd.f32 %v909, 1.0
  %v975 = vadd.f32 %v911, 1.0
  %v976 = vrcp.pop %v912
  %v977 = vrcp.pop %v913
  %v978 = vrcp.pop %v914
  %v979 = vrcp.pop %v915
  %v980 = vrcp.pop %v916
  %v981 = vrcp.pop %v917
  %v982 = vrcp.pop %v918
  %v983 = vrcp.pop %v919
  %v984 = vrcp.pop %v920
  %v985 = vrcp.pop %v921
  %v986 = vrcp.pop %v922
  %v987 = vrcp.pop %v923
  %v988 = vrcp.pop %v924
  %v989 = vrcp.pop %v925
  %v990 = vrcp.pop %v926
  %v991 = vrcp.pop %v927
  %v992 = vrcp.pop %v928
  %v993 = vrcp.pop %v929
  %v994 = vrcp.pop %v930
  %v995 = vrcp.pop %v931
  %v996 = vrcp.pop %v932
  %v997 = vrcp.pop %v933
  %v998 = vrcp.pop %v934
  %v999 = vrcp.pop %v935
  %v1000 = vrcp.pop %v936
  %v1001 = vrcp.pop %v937
  %v1002 = vrcp.pop %v938
  %v1003 = vrcp.pop %v939
  %v1004 = vrcp.pop %v940
  %v1005 = vrcp.pop %v941
  %v1006 = vrcp.pop %v942
  %v1007 = vrcp.pop %v943
  %v1008 = vrcp.pop %v944
  %v1009 = vrcp.pop %v945
  %v1010 = vrcp.pop %v946
  %v1011 = vrcp.pop %v947
  %v1012 = vrcp.pop %v948
  %v1013 = vrcp.pop %v949
  %v1014 = vrcp.pop %v950
  %v1015 = vrcp.pop %v951
  %v1016 = vrcp.pop %v952
  %v1017 = vrcp.pop %v953
  %v1018 = vrcp.pop %v954
  %v1019 = vrcp.pop %v955
  %v1020 = vrcp.pop %v956
  %v1021 = vrcp.pop %v957
  %v1022 = vrcp.pop %v958
  %v1023 = vrcp.pop %v959
  %v1024 = vrcp.pop %v960
  %v1025 = vrcp.pop %v961
  %v1026 = vrcp.pop %v962
  %v1027 = vrcp.pop %v963
  %v1028 = vrcp.pop %v964
  %v1029 = vrcp.pop %v965
  %v1030 = vrcp.pop %v966
  %v1031 = vrcp.pop %v967
  %v1032 = vrcp.pop %v968
  %v1033 = vrcp.pop %v969
  %v1034 = vrcp.pop %v970
  %v1035 = vrcp.pop %v971
  %v1036 = vrcp.pop %v972
  %v1037 = vrcp.pop %v973
  %v1038 = vrcp.pop %v974
  %v1039 = vrcp.pop %v975
  %v1040 = vmul.f32 %v402, %v976
  %v1041 = vmul.f32 %v405, %v977
  %v1042 = vmul.f32 %v410, %v978
  %v1043 = vmul.f32 %v413, %v979
  %v1044 = vmul.f32 %v418, %v980
  %v1045 = vmul.f32 %v421, %v981
  %v1046 = vmul.f32 %v426, %v982
  %v1047 = vmul.f32 %v429, %v983
  %v1048 = vmul.f32 %v434, %v984
  %v1049 = vmul.f32 %v437, %v985
  %v1050 = vmul.f32 %v442, %v986
  %v1051 = vmul.f32 %v445, %v987
  %v1052 = vmul.f32 %v450, %v988
  %v1053 = vmul.f32 %v453, %v989
  %v1054 = vmul.f32 %v458, %v990
  %v1055 = vmul.f32 %v461, %v991
  %v1056 = vmul.f32 %v466, %v992
  %v1057 = vmul.f32 %v469, %v993
  %v1058 = vmul.f32 %v474, %v994
  %v1059 = vmul.f32 %v477, %v995
  %v1060 = vmul.f32 %v482, %v996
  %v1061 = vmul.f32 %v485, %v997
  %v1062 = vmul.f32 %v490, %v998
  %v1063 = vmul.f32 %v493, %v999
  %v1064 = vmul.f32 %v498, %v1000
  %v1065 = vmul.f32 %v501, %v1001
  %v1066 = vmul.f32 %v506, %v1002
  %v1067 = vmul.f32 %v509, %v1003
  %v1068 = vmul.f32 %v514, %v1004
  %v1069 = vmul.f32 %v517, %v1005
  %v1070 = vmul.f32 %v522, %v1006
  %v1071 = vmul.f32 %v525, %v1007
  %v1072 = vmul.f32 %v530, %v1008
  %v1073 = vmul.f32 %v533, %v1009
  %v1074 = vmul.f32 %v538, %v1010
  %v1075 = vmul.f32 %v541, %v1011
  %v1076 = vmul.f32 %v546, %v1012
  %v1077 = vmul.f32 %v549, %v1013
  %v1078 = vmul.f32 %v554, %v1014
  %v1079 = vmul.f32 %v557, %v1015
  %v1080 = vmul.f32 %v562, %v1016
  %v1081 = vmul.f32 %v565, %v1017
  %v1082 = vmul.f32 %v570, %v1018
  %v1083 = vmul.f32 %v573, %v1019
  %v1084 = vmul.f32 %v578, %v1020
  %v1085 = vmul.f32 %v581, %v1021
  %v1086 = vmul.f32 %v586, %v1022
  %v1087 = vmul.f32 %v589, %v1023
  %v1088 = vmul.f32 %v594, %v1024
  %v1089 = vmul.f32 %v597, %v1025
  %v1090 = vmul.f32 %v602, %v1026
  %v1091 = vmul.f32 %v605, %v1027
  %v1092 = vmul.f32 %v610, %v1028
  %v1093 = vmul.f32 %v613, %v1029
  %v1094 = vmul.f32 %v618, %v1030
  %v1095 = vmul.f32 %v621, %v1031
  %v1096 = vmul.f32 %v626, %v1032
  %v1097 = vmul.f32 %v629, %v1033
  %v1098 = vmul.f32 %v634, %v1034
  %v1099 = vmul.f32 %v637, %v1035
  %v1100 = vmul.f32 %v642, %v1036
  %v1101 = vmul.f32 %v645, %v1037
  %v1102 = vmul.f32 %v650, %v1038
  %v1103 = vmul.f32 %v653, %v1039
  %v1104 = vpack.c.bf16 %v1041, %v1040
  %v1105 = vpack.c.bf16 %v1043, %v1042
  %v1106 = vpack.c.bf16 %v1045, %v1044
  %v1107 = vpack.c.bf16 %v1047, %v1046
  %v1108 = vpack.c.bf16 %v1049, %v1048
  %v1109 = vpack.c.bf16 %v1051, %v1050
  %v1110 = vpack.c.bf16 %v1053, %v1052
  %v1111 = vpack.c.bf16 %v1055, %v1054
  %v1112 = vpack.c.bf16 %v1057, %v1056
  %v1113 = vpack.c.bf16 %v1059, %v1058
  %v1114 = vpack.c.bf16 %v1061, %v1060
  %v1115 = vpack.c.bf16 %v1063, %v1062
  %v1116 = vpack.c.bf16 %v1065, %v1064
  %v1117 = vpack.c.bf16 %v1067, %v1066
  %v1118 = vpack.c.bf16 %v1069, %v1068
  %v1119 = vpack.c.bf16 %v1071, %v1070
  %v1120 = vpack.c.bf16 %v1073, %v1072
  %v1121 = vpack.c.bf16 %v1075, %v1074
  %v1122 = vpack.c.bf16 %v1077, %v1076
  %v1123 = vpack.c.bf16 %v1079, %v1078
  %v1124 = vpack.c.bf16 %v1081, %v1080
  %v1125 = vpack.c.bf16 %v1083, %v1082
  %v1126 = vpack.c.bf16 %v1085, %v1084
  %v1127 = vpack.c.bf16 %v1087, %v1086
  %v1128 = vpack.c.bf16 %v1089, %v1088
  %v1129 = vpack.c.bf16 %v1091, %v1090
  %v1130 = vpack.c.bf16 %v1093, %v1092
  %v1131 = vpack.c.bf16 %v1095, %v1094
  %v1132 = vpack.c.bf16 %v1097, %v1096
  %v1133 = vpack.c.bf16 %v1099, %v1098
  %v1134 = vpack.c.bf16 %v1101, %v1100
  %v1135 = vpack.c.bf16 %v1103, %v1102
  %v1168 = vunpack.c.l.b16 %v1104
  %v1169 = vunpack.c.h.b16 %v1104
  %v1170 = vunpack.c.l.b16 %v1105
  %v1171 = vunpack.c.h.b16 %v1105
  %v1172 = vunpack.c.l.b16 %v1106
  %v1173 = vunpack.c.h.b16 %v1106
  %v1174 = vunpack.c.l.b16 %v1107
  %v1175 = vunpack.c.h.b16 %v1107
  %v1176 = vunpack.c.l.b16 %v1108
  %v1177 = vunpack.c.h.b16 %v1108
  %v1178 = vunpack.c.l.b16 %v1109
  %v1179 = vunpack.c.h.b16 %v1109
  %v1180 = vunpack.c.l.b16 %v1110
  %v1181 = vunpack.c.h.b16 %v1110
  %v1182 = vunpack.c.l.b16 %v1111
  %v1183 = vunpack.c.h.b16 %v1111
  %v1184 = vunpack.c.l.b16 %v1112
  %v1185 = vunpack.c.h.b16 %v1112
  %v1186 = vunpack.c.l.b16 %v1113
  %v1187 = vunpack.c.h.b16 %v1113
  %v1188 = vunpack.c.l.b16 %v1114
  %v1189 = vunpack.c.h.b16 %v1114
  %v1190 = vunpack.c.l.b16 %v1115
  %v1191 = vunpack.c.h.b16 %v1115
  %v1192 = vunpack.c.l.b16 %v1116
  %v1193 = vunpack.c.h.b16 %v1116
  %v1194 = vunpack.c.l.b16 %v1117
  %v1195 = vunpack.c.h.b16 %v1117
  %v1196 = vunpack.c.l.b16 %v1118
  %v1197 = vunpack.c.h.b16 %v1118
  %v1198 = vunpack.c.l.b16 %v1119
  %v1199 = vunpack.c.h.b16 %v1119
  %v1200 = vunpack.c.l.b16 %v1120
  %v1201 = vunpack.c.h.b16 %v1120
  %v1202 = vunpack.c.l.b16 %v1121
  %v1203 = vunpack.c.h.b16 %v1121
  %v1204 = vunpack.c.l.b16 %v1122
  %v1205 = vunpack.c.h.b16 %v1122
  %v1206 = vunpack.c.l.b16 %v1123
  %v1207 = vunpack.c.h.b16 %v1123
  %v1208 = vunpack.c.l.b16 %v1124
  %v1209 = vunpack.c.h.b16 %v1124
  %v1210 = vunpack.c.l.b16 %v1125
  %v1211 = vunpack.c.h.b16 %v1125
  %v1212 = vunpack.c.l.b16 %v1126
  %v1213 = vunpack.c.h.b16 %v1126
  %v1214 = vunpack.c.l.b16 %v1127
  %v1215 = vunpack.c.h.b16 %v1127
  %v1216 = vunpack.c.l.b16 %v1128
  %v1217 = vunpack.c.h.b16 %v1128
  %v1218 = vunpack.c.l.b16 %v1129
  %v1219 = vunpack.c.h.b16 %v1129
  %v1220 = vunpack.c.l.b16 %v1130
  %v1221 = vunpack.c.h.b16 %v1130
  %v1222 = vunpack.c.l.b16 %v1131
  %v1223 = vunpack.c.h.b16 %v1131
  %v1224 = vunpack.c.l.b16 %v1132
  %v1225 = vunpack.c.h.b16 %v1132
  %v1226 = vunpack.c.l.b16 %v1133
  %v1227 = vunpack.c.h.b16 %v1133
  %v1228 = vunpack.c.l.b16 %v1134
  %v1229 = vunpack.c.h.b16 %v1134
  %v1230 = vunpack.c.l.b16 %v1135
  %v1231 = vunpack.c.h.b16 %v1135
  %v1232 = vpack.c.b16 %v1168, %v1168
  %v1233 = vpack.c.b16 %v1169, %v1169
  %v1234 = vpack.c.b16 %v1170, %v1170
  %v1235 = vpack.c.b16 %v1171, %v1171
  %v1236 = vpack.c.b16 %v1172, %v1172
  %v1237 = vpack.c.b16 %v1173, %v1173
  %v1238 = vpack.c.b16 %v1174, %v1174
  %v1239 = vpack.c.b16 %v1175, %v1175
  %v1240 = vpack.c.b16 %v1176, %v1176
  %v1241 = vpack.c.b16 %v1177, %v1177
  %v1242 = vpack.c.b16 %v1178, %v1178
  %v1243 = vpack.c.b16 %v1179, %v1179
  %v1244 = vpack.c.b16 %v1180, %v1180
  %v1245 = vpack.c.b16 %v1181, %v1181
  %v1246 = vpack.c.b16 %v1182, %v1182
  %v1247 = vpack.c.b16 %v1183, %v1183
  %v1248 = vpack.c.b16 %v1184, %v1184
  %v1249 = vpack.c.b16 %v1185, %v1185
  %v1250 = vpack.c.b16 %v1186, %v1186
  %v1251 = vpack.c.b16 %v1187, %v1187
  %v1252 = vpack.c.b16 %v1188, %v1188
  %v1253 = vpack.c.b16 %v1189, %v1189
  %v1254 = vpack.c.b16 %v1190, %v1190
  %v1255 = vpack.c.b16 %v1191, %v1191
  %v1256 = vpack.c.b16 %v1192, %v1192
  %v1257 = vpack.c.b16 %v1193, %v1193
  %v1258 = vpack.c.b16 %v1194, %v1194
  %v1259 = vpack.c.b16 %v1195, %v1195
  %v1260 = vpack.c.b16 %v1196, %v1196
  %v1261 = vpack.c.b16 %v1197, %v1197
  %v1262 = vpack.c.b16 %v1198, %v1198
  %v1263 = vpack.c.b16 %v1199, %v1199
  %v1264 = vpack.c.b16 %v1200, %v1200
  %v1265 = vpack.c.b16 %v1201, %v1201
  %v1266 = vpack.c.b16 %v1202, %v1202
  %v1267 = vpack.c.b16 %v1203, %v1203
  %v1268 = vpack.c.b16 %v1204, %v1204
  %v1269 = vpack.c.b16 %v1205, %v1205
  %v1270 = vpack.c.b16 %v1206, %v1206
  %v1271 = vpack.c.b16 %v1207, %v1207
  %v1272 = vpack.c.b16 %v1208, %v1208
  %v1273 = vpack.c.b16 %v1209, %v1209
  %v1274 = vpack.c.b16 %v1210, %v1210
  %v1275 = vpack.c.b16 %v1211, %v1211
  %v1276 = vpack.c.b16 %v1212, %v1212
  %v1277 = vpack.c.b16 %v1213, %v1213
  %v1278 = vpack.c.b16 %v1214, %v1214
  %v1279 = vpack.c.b16 %v1215, %v1215
  %v1280 = vpack.c.b16 %v1216, %v1216
  %v1281 = vpack.c.b16 %v1217, %v1217
  %v1282 = vpack.c.b16 %v1218, %v1218
  %v1283 = vpack.c.b16 %v1219, %v1219
  %v1284 = vpack.c.b16 %v1220, %v1220
  %v1285 = vpack.c.b16 %v1221, %v1221
  %v1286 = vpack.c.b16 %v1222, %v1222
  %v1287 = vpack.c.b16 %v1223, %v1223
  %v1288 = vpack.c.b16 %v1224, %v1224
  %v1289 = vpack.c.b16 %v1225, %v1225
  %v1290 = vpack.c.b16 %v1226, %v1226
  %v1291 = vpack.c.b16 %v1227, %v1227
  %v1292 = vpack.c.b16 %v1228, %v1228
  %v1293 = vpack.c.b16 %v1229, %v1229
  %v1294 = vpack.c.b16 %v1230, %v1230
  %v1295 = vpack.c.b16 %v1231, %v1231
  %1360 = vst [vmem:[%s3] sm:$0xf] %v1232
  %1361 = vst [vmem:[%s3 + $0x4] sm:$0xf] %v1233
  %1362 = vst [vmem:[%s3 + $0x8] sm:$0xf] %v1234
  %1363 = vst [vmem:[%s3 + $0xc] sm:$0xf] %v1235
  %1364 = vst [vmem:[%s3 + $0x10] sm:$0xf] %v1236
  %1365 = vst [vmem:[%s3 + $0x14] sm:$0xf] %v1237
  %1366 = vst [vmem:[%s3 + $0x18] sm:$0xf] %v1238
  %1367 = vst [vmem:[%s3 + $0x1c] sm:$0xf] %v1239
  %1368 = vst [vmem:[%s3 + $0x20] sm:$0xf] %v1240
  %1369 = vst [vmem:[%s3 + $0x24] sm:$0xf] %v1241
  %1370 = vst [vmem:[%s3 + $0x28] sm:$0xf] %v1242
  %1371 = vst [vmem:[%s3 + $0x2c] sm:$0xf] %v1243
  %1372 = vst [vmem:[%s3 + $0x30] sm:$0xf] %v1244
  %1373 = vst [vmem:[%s3 + $0x34] sm:$0xf] %v1245
  %1374 = vst [vmem:[%s3 + $0x38] sm:$0xf] %v1246
  %1375 = vst [vmem:[%s3 + $0x3c] sm:$0xf] %v1247
  %1376 = vst [vmem:[%s3 + $0x40] sm:$0xf] %v1248
  %1377 = vst [vmem:[%s3 + $0x44] sm:$0xf] %v1249
  %1378 = vst [vmem:[%s3 + $0x48] sm:$0xf] %v1250
  %1379 = vst [vmem:[%s3 + $0x4c] sm:$0xf] %v1251
  %1380 = vst [vmem:[%s3 + $0x50] sm:$0xf] %v1252
  %1381 = vst [vmem:[%s3 + $0x54] sm:$0xf] %v1253
  %1382 = vst [vmem:[%s3 + $0x58] sm:$0xf] %v1254
  %1383 = vst [vmem:[%s3 + $0x5c] sm:$0xf] %v1255
  %1384 = vst [vmem:[%s3 + $0x60] sm:$0xf] %v1256
  %1385 = vst [vmem:[%s3 + $0x64] sm:$0xf] %v1257
  %1386 = vst [vmem:[%s3 + $0x68] sm:$0xf] %v1258
  %1387 = vst [vmem:[%s3 + $0x6c] sm:$0xf] %v1259
  %1388 = vst [vmem:[%s3 + $0x70] sm:$0xf] %v1260
  %1389 = vst [vmem:[%s3 + $0x74] sm:$0xf] %v1261
  %1390 = vst [vmem:[%s3 + $0x78] sm:$0xf] %v1262
  %1391 = vst [vmem:[%s3 + $0x7c] sm:$0xf] %v1263
  %1392 = vst [vmem:[%s3 + $0x80] sm:$0xf] %v1264
  %1393 = vst [vmem:[%s3 + $0x84] sm:$0xf] %v1265
  %1394 = vst [vmem:[%s3 + $0x88] sm:$0xf] %v1266
  %1395 = vst [vmem:[%s3 + $0x8c] sm:$0xf] %v1267
  %1396 = vst [vmem:[%s3 + $0x90] sm:$0xf] %v1268
  %1397 = vst [vmem:[%s3 + $0x94] sm:$0xf] %v1269
  %1398 = vst [vmem:[%s3 + $0x98] sm:$0xf] %v1270
  %1399 = vst [vmem:[%s3 + $0x9c] sm:$0xf] %v1271
  %1400 = vst [vmem:[%s3 + $0xa0] sm:$0xf] %v1272
  %1401 = vst [vmem:[%s3 + $0xa4] sm:$0xf] %v1273
  %1402 = vst [vmem:[%s3 + $0xa8] sm:$0xf] %v1274
  %1403 = vst [vmem:[%s3 + $0xac] sm:$0xf] %v1275
  %1404 = vst [vmem:[%s3 + $0xb0] sm:$0xf] %v1276
  %1405 = vst [vmem:[%s3 + $0xb4] sm:$0xf] %v1277
  %1406 = vst [vmem:[%s3 + $0xb8] sm:$0xf] %v1278
  %1407 = vst [vmem:[%s3 + $0xbc] sm:$0xf] %v1279
  %1408 = vst [vmem:[%s3 + $0xc0] sm:$0xf] %v1280
  %1409 = vst [vmem:[%s3 + $0xc4] sm:$0xf] %v1281
  %1410 = vst [vmem:[%s3 + $0xc8] sm:$0xf] %v1282
  %1411 = vst [vmem:[%s3 + $0xcc] sm:$0xf] %v1283
  %1412 = vst [vmem:[%s3 + $0xd0] sm:$0xf] %v1284
  %1413 = vst [vmem:[%s3 + $0xd4] sm:$0xf] %v1285
  %1414 = vst [vmem:[%s3 + $0xd8] sm:$0xf] %v1286
  %1415 = vst [vmem:[%s3 + $0xdc] sm:$0xf] %v1287
  %1416 = vst [vmem:[%s3 + $0xe0] sm:$0xf] %v1288
  %1417 = vst [vmem:[%s3 + $0xe4] sm:$0xf] %v1289
  %1418 = vst [vmem:[%s3 + $0xe8] sm:$0xf] %v1290
  %1419 = vst [vmem:[%s3 + $0xec] sm:$0xf] %v1291
  %1420 = vst [vmem:[%s3 + $0xf0] sm:$0xf] %v1292
  %1421 = vst [vmem:[%s3 + $0xf4] sm:$0xf] %v1293
  %1422 = vst [vmem:[%s3 + $0xf8] sm:$0xf] %v1294
  %1423 = vst [vmem:[%s3 + $0xfc] sm:$0xf] %v1295
  // Predicated region
  $region14: #{tt_conv_forward.1} parent=0 // pred_check
    _
  $region15: #{tt_conv_forward.1} parent=0 // pred_check_branch
    %1425 = sbr.rel (0) target = $region17
  $region16: #{tt_conv_forward.1} parent=0 // pred_region
    _
  $region17: #{tt_conv_forward.1} parent=0 // pred_fallthru
    _
  // Predicated region
  $region18: #{tt_conv_forward.1} parent=0 // pred_check
    _
  $region19: #{tt_conv_forward.1} parent=0 // pred_check_branch
    %1427 = sbr.rel (0) target = $region21
  $region20: #{tt_conv_forward.1} parent=0 // pred_region
    _
  $region21: #{tt_conv_forward.1} parent=0 // pred_fallthru
    _

</llo_original>
